<compile_context>
chip_gen: v6e
topology: v6e:2x2x1
jax: 0.10.0
libtpu: 0.0.40
codegen_flags: <defaults>
</compile_context>

<pallas_src>
import functools
import math

import jax
import jax.numpy as jnp
from jax import lax
from jax.experimental import pallas as pl
from jax.experimental.pallas import tpu as pltpu


# exp(-1e4) == 0 exactly in f32, so padded lanes contribute exactly 0 to every sum.
_MASK_LOGIT = -1e4


# ---------------------------------------------------------------------------
# Pallas kernel: lane-dense tiles, per-(b,c) partial sums accumulated directly
# into per-split output blocks (resident across the "arbitrary" grid axis).
# ---------------------------------------------------------------------------
def _dc_bce_kernel(x_ref, y_ref, inter_ref, spred_ref, sgt_ref, bce_ref, *,
                   npc, nt, tl, n_valid, ragged):
    c = pl.program_id(0)           # split index ("parallel" -> both TCs on v7x)
    i = pl.program_id(1)           # lane-tile index within this split
    tile = c * npc + i             # logical lane-tile index

    @pl.when(i == 0)
    def _init():
        inter_ref[...] = jnp.zeros_like(inter_ref)
        spred_ref[...] = jnp.zeros_like(spred_ref)
        sgt_ref[...] = jnp.zeros_like(sgt_ref)
        bce_ref[...] = jnp.zeros_like(bce_ref)

    @pl.when(tile < nt)            # skip the clamped duplicate tile on an odd split
    def _accumulate():
        x = x_ref[...].astype(jnp.float32)       # [BC, tl], lanes = flattened spatial
        y = y_ref[...].astype(jnp.float32)       # one-hot target (bf16 in HBM)
        if ragged:
            pos = tile * tl + lax.broadcasted_iota(jnp.int32, x.shape, 1)
            valid = pos < n_valid
            x = jnp.where(valid, x, _MASK_LOGIT)  # padded lanes -> sigmoid=0, bce=0
            y = jnp.where(valid, y, 0.0)

        # Shared transcendentals: one exp, one reciprocal, one log per element.
        e = jnp.exp(-jnp.abs(x))
        inv = 1.0 / (1.0 + e)
        sig = jnp.where(x >= 0.0, 1.0, e) * inv               # == sigmoid(x), stable
        # log(1+e) with e in (0,1]; log1p would only change sub-1e-8 bits here.
        bce = jnp.maximum(x, 0.0) - x * y + jnp.log(1.0 + e)  # BCEWithLogits per elem

        inter_ref[...] += jnp.sum(sig * y, axis=1, keepdims=True)
        spred_ref[...] += jnp.sum(sig, axis=1, keepdims=True)
        sgt_ref[...] += jnp.sum(y, axis=1, keepdims=True)
        bce_ref[...] += jnp.sum(bce, axis=1, keepdims=True)


# ---------------------------------------------------------------------------
# tile / VMEM planning (per TPU generation)
# ---------------------------------------------------------------------------
def _vmem_plan(bc_pad, L, itemsize_sum, max_tile_lanes=None):
    try:
        cap = int(pltpu.get_tpu_info().vmem_capacity_bytes)
    except Exception:
        cap = 64 << 20                      # conservative (v7x-sized) fallback
    step_budget = min(cap // 5, 24 << 20)   # combined x+y tile bytes per grid step
    if L <= 128:
        tl = L                              # full (short) lane dim in one tile
    else:
        lanes = max(128, (step_budget // max(1, bc_pad * itemsize_sum)) // 128 * 128)
        if max_tile_lanes is not None:
            lanes = max(128, (min(lanes, int(max_tile_lanes)) // 128) * 128)
        tl = int(min(lanes, (L // 128) * 128))   # never exceed the array dim
    tile_bytes = bc_pad * tl * itemsize_sum
    vmem_limit = int(min(cap * 15 // 16,
                         max(32 << 20, int(2.5 * tile_bytes) + (4 << 20))))
    return tl, vmem_limit


def _prep_logits(x):
    if (not jnp.issubdtype(x.dtype, jnp.floating)) or jnp.dtype(x.dtype).itemsize > 4:
        return x.astype(jnp.float32)
    return x                                # f32 / bf16 / f16 pass through


def _prep_target(y):
    dt = jnp.dtype(y.dtype)
    if y.dtype == jnp.bool_:
        return y.astype(jnp.bfloat16)
    if jnp.issubdtype(dt, jnp.floating):
        # one-hot 0/1 is exact in bf16 -> halve target HBM traffic
        return y.astype(jnp.bfloat16) if dt.itemsize > 2 else y
    if jnp.issubdtype(dt, jnp.integer):
        if dt.itemsize < 4:
            return y.astype(jnp.bfloat16)
        if dt.itemsize > 4:
            return y.astype(jnp.int32)
        return y                             # int32 read directly, cast in VMEM
    return y.astype(jnp.float32)


# ---------------------------------------------------------------------------
# wrapper: pallas_call + tiny JAX epilogue (combine per-split partial sums)
# ---------------------------------------------------------------------------
def dc_and_bce_loss(net_output, target, *, weight_ce=1.0, weight_dice=1.0,
                    smooth=1e-5, batch_dice=True, do_bg=True,
                    use_ignore_label=False, max_tile_lanes=None):
    """DC_and_BCE_loss.forward.

    net_output: [B, C, *spatial] logits (no nonlinearity applied).
    target:     [B, C, *spatial] one-hot encoded regions.
    """
    if use_ignore_label:
        # TODO(synk): ignore-label masking path not implemented (module default False).
        raise NotImplementedError("use_ignore_label=True is not supported")

    assert target.shape == net_output.shape, \
        "target must be one-hot encoded with the same shape as net_output"
    B, C = net_output.shape[:2]
    L = int(math.prod(net_output.shape[2:]))
    BC = B * C

    x = _prep_logits(net_output).reshape(BC, L)   # free contiguous reshape
    y = _prep_target(target).reshape(BC, L)

    itemsize_sum = jnp.dtype(x.dtype).itemsize + jnp.dtype(y.dtype).itemsize
    bc_pad = ((BC + 7) // 8) * 8
    tl, vmem_limit = _vmem_plan(bc_pad, L, itemsize_sum, max_tile_lanes)

    nt = int(pl.cdiv(L, tl))                      # total lane tiles
    nsplit = 2 if nt >= 2 else 1                  # 2-way split -> both TCs on v7x
    npc = int(pl.cdiv(nt, nsplit))                # tiles per split
    ragged = (L % tl) != 0

    kernel = functools.partial(_dc_bce_kernel, npc=npc, nt=nt, tl=int(tl),
                               n_valid=int(L), ragged=bool(ragged))

    in_idx = lambda c, i: (0, jnp.minimum(c * npc + i, nt - 1))
    out_spec = pl.BlockSpec((None, BC, 1), lambda c, i: (c, 0, 0))
    part_shape = jax.ShapeDtypeStruct((nsplit, BC, 1), jnp.float32)

    inter, spred, sgt, bce = pl.pallas_call(
        kernel,
        out_shape=(part_shape,) * 4,
        grid_spec=pltpu.PrefetchScalarGridSpec(
            num_scalar_prefetch=0,
            grid=(nsplit, npc),
            in_specs=[pl.BlockSpec((BC, tl), in_idx),
                      pl.BlockSpec((BC, tl), in_idx)],
            out_specs=(out_spec,) * 4,
        ),
        compiler_params=pltpu.CompilerParams(
            dimension_semantics=("parallel", "arbitrary"),
            vmem_limit_bytes=int(vmem_limit)),
    )(x, y)

    # --- tiny JAX epilogue: combine per-split partial sums into the scalar loss ---
    inter = inter.sum(axis=0).reshape(B, C)
    spred = spred.sum(axis=0).reshape(B, C)
    sgt = sgt.sum(axis=0).reshape(B, C)
    bce_total = bce.sum()

    if not do_bg:
        inter, spred, sgt = inter[:, 1:], spred[:, 1:], sgt[:, 1:]
    if batch_dice:
        inter, spred, sgt = inter.sum(0), spred.sum(0), sgt.sum(0)
    dc = (2.0 * inter + smooth) / jnp.maximum(spred + sgt + smooth, 1e-8)
    dice_loss = -jnp.mean(dc)
    ce_loss = bce_total / float(BC * L)           # BCEWithLogitsLoss 'mean'
    return weight_ce * ce_loss + weight_dice * dice_loss


# ---------------------------------------------------------------------------
# pure-JAX reference (torch-faithful semantics) for verification
# ---------------------------------------------------------------------------
def _reference_loss(net_output, target, *, weight_ce=1.0, weight_dice=1.0,
                    smooth=1e-5, batch_dice=True, do_bg=True):
    x = net_output.astype(jnp.float32)
    y = target.astype(jnp.float32)
    sig = jax.nn.sigmoid(x)
    sig_d, y_d = (sig, y) if do_bg else (sig[:, 1:], y[:, 1:])
    axes = tuple(range(2, x.ndim))
    intersect = jnp.sum(sig_d * y_d, axis=axes)
    sum_pred = jnp.sum(sig_d, axis=axes)
    sum_gt = jnp.sum(y_d, axis=axes)
    if batch_dice:
        intersect, sum_pred, sum_gt = intersect.sum(0), sum_pred.sum(0), sum_gt.sum(0)
    dc = (2.0 * intersect + smooth) / jnp.maximum(sum_pred + sum_gt + smooth, 1e-8)
    dice_loss = -jnp.mean(dc)
    bce = jnp.maximum(x, 0.0) - x * y + jnp.log(1.0 + jnp.exp(-jnp.abs(x)))
    ce_loss = jnp.mean(bce)
    return weight_ce * ce_loss + weight_dice * dice_loss


if __name__ == "__main__":
    key = jax.random.PRNGKey(0)
    k1, k2, k3, k4 = jax.random.split(key, 4)

    # Primary case: B=2, C=4, 16x16 spatial, bf16 one-hot target.
    # max_tile_lanes=128 -> 2 lane tiles -> exercises the 2-way "parallel" split.
    B, C, H, W = 2, 4, 16, 16
    x1 = jax.random.normal(k1, (B, C, H, W), dtype=jnp.float32)
    lab1 = jax.random.randint(k2, (B, H, W), 0, C)
    y1 = jax.nn.one_hot(lab1, C, axis=1, dtype=jnp.bfloat16)
    loss1 = jax.block_until_ready(dc_and_bce_loss(x1, y1, max_tile_lanes=128))
    ref1 = jax.block_until_ready(_reference_loss(x1, y1))
    assert jnp.isfinite(loss1), "loss is not finite"
    assert jnp.allclose(loss1, ref1, rtol=1e-4, atol=1e-5), (loss1, ref1)

    # Ragged case: 16x20 spatial -> L=320, tl=128 -> 3 tiles split 2/2 (one clamped
    # duplicate skipped) + masked tail; f32 target exercises the bf16 downcast path.
    H2, W2 = 16, 20
    x2 = jax.random.normal(k3, (B, C, H2, W2), dtype=jnp.float32)
    lab2 = jax.random.randint(k4, (B, H2, W2), 0, C)
    y2 = jax.nn.one_hot(lab2, C, axis=1, dtype=jnp.float32)
    loss2 = jax.block_until_ready(dc_and_bce_loss(x2, y2, max_tile_lanes=128))
    ref2 = jax.block_until_ready(_reference_loss(x2, y2))
    assert jnp.isfinite(loss2), "loss is not finite"
    assert jnp.allclose(loss2, ref2, rtol=1e-4, atol=1e-5), (loss2, ref2)

    print("KERNEL_OK")
</pallas_src>

<mosaic_0001>
module attributes {stable_mosaic.version = 11 : i64} {
  func.func @_dc_bce_kernel(%arg0: i32, %arg1: i32, %arg2: memref<8x128xf32, #tpu.memory_space<vmem>>, %arg3: memref<8x128xbf16, #tpu.memory_space<vmem>>, %arg4: memref<1x8x1xf32, #tpu.memory_space<vmem>>, %arg5: memref<1x8x1xf32, #tpu.memory_space<vmem>>, %arg6: memref<1x8x1xf32, #tpu.memory_space<vmem>>, %arg7: memref<1x8x1xf32, #tpu.memory_space<vmem>>) attributes {dimension_semantics = [#tpu.dimension_semantics<parallel>, #tpu.dimension_semantics<arbitrary>], iteration_bounds = array<i64: 2, 1>, scalar_prefetch = 0 : i64, scratch_operands = 0 : i64, tpu.core_type = #tpu.core_type<tc>, window_params = [{transform_indices = @transform_0, window_bounds = array<i64: 8, 128>}, {transform_indices = @transform_1, window_bounds = array<i64: 8, 128>}, {transform_indices = @transform_2, window_bounds = array<i64: 1, 8, 1>}, {transform_indices = @transform_3, window_bounds = array<i64: 1, 8, 1>}, {transform_indices = @transform_4, window_bounds = array<i64: 1, 8, 1>}, {transform_indices = @transform_5, window_bounds = array<i64: 1, 8, 1>}]} {
    %c1_i32 = arith.constant 1 : i32
    %0 = arith.muli %arg0, %c1_i32 : i32
    %1 = arith.addi %0, %arg1 : i32
    %c0_i32 = arith.constant 0 : i32
    %2 = arith.cmpi eq, %arg1, %c0_i32 : i32
    %3 = arith.extui %2 : i1 to i32
    %c0_i32_0 = arith.constant 0 : i32
    %4 = arith.cmpi ne, %3, %c0_i32_0 : i32
    scf.if %4 {
      %cst = arith.constant 0.000000e+00 : f32
      %8 = vector.broadcast %cst : f32 to vector<8x1xf32>
      %c0 = arith.constant 0 : index
      %c0_2 = arith.constant 0 : index
      %c0_3 = arith.constant 0 : index
      %9 = vector.load %arg4[%c0, %c0_2, %c0_3] : memref<1x8x1xf32, #tpu.memory_space<vmem>>, vector<1x8x1xf32>
      %10 = vector.shape_cast %9 : vector<1x8x1xf32> to vector<8x1xf32>
      %11 = vector.shape_cast %8 : vector<8x1xf32> to vector<1x8x1xf32>
      tpu.vector_store %arg4[%c0, %c0_2, %c0_3], %11 {strides = array<i32>} : memref<1x8x1xf32, #tpu.memory_space<vmem>>, vector<1x8x1xf32>,
      %cst_4 = arith.constant 0.000000e+00 : f32
      %12 = vector.broadcast %cst_4 : f32 to vector<8x1xf32>
      %c0_5 = arith.constant 0 : index
      %c0_6 = arith.constant 0 : index
      %c0_7 = arith.constant 0 : index
      %13 = vector.load %arg5[%c0_5, %c0_6, %c0_7] : memref<1x8x1xf32, #tpu.memory_space<vmem>>, vector<1x8x1xf32>
      %14 = vector.shape_cast %13 : vector<1x8x1xf32> to vector<8x1xf32>
      %15 = vector.shape_cast %12 : vector<8x1xf32> to vector<1x8x1xf32>
      tpu.vector_store %arg5[%c0_5, %c0_6, %c0_7], %15 {strides = array<i32>} : memref<1x8x1xf32, #tpu.memory_space<vmem>>, vector<1x8x1xf32>,
      %cst_8 = arith.constant 0.000000e+00 : f32
      %16 = vector.broadcast %cst_8 : f32 to vector<8x1xf32>
      %c0_9 = arith.constant 0 : index
      %c0_10 = arith.constant 0 : index
      %c0_11 = arith.constant 0 : index
      %17 = vector.load %arg6[%c0_9, %c0_10, %c0_11] : memref<1x8x1xf32, #tpu.memory_space<vmem>>, vector<1x8x1xf32>
      %18 = vector.shape_cast %17 : vector<1x8x1xf32> to vector<8x1xf32>
      %19 = vector.shape_cast %16 : vector<8x1xf32> to vector<1x8x1xf32>
      tpu.vector_store %arg6[%c0_9, %c0_10, %c0_11], %19 {strides = array<i32>} : memref<1x8x1xf32, #tpu.memory_space<vmem>>, vector<1x8x1xf32>,
      %cst_12 = arith.constant 0.000000e+00 : f32
      %20 = vector.broadcast %cst_12 : f32 to vector<8x1xf32>
      %c0_13 = arith.constant 0 : index
      %c0_14 = arith.constant 0 : index
      %c0_15 = arith.constant 0 : index
      %21 = vector.load %arg7[%c0_13, %c0_14, %c0_15] : memref<1x8x1xf32, #tpu.memory_space<vmem>>, vector<1x8x1xf32>
      %22 = vector.shape_cast %21 : vector<1x8x1xf32> to vector<8x1xf32>
      %23 = vector.shape_cast %20 : vector<8x1xf32> to vector<1x8x1xf32>
      tpu.vector_store %arg7[%c0_13, %c0_14, %c0_15], %23 {strides = array<i32>} : memref<1x8x1xf32, #tpu.memory_space<vmem>>, vector<1x8x1xf32>,
    } else {
    }
    %c2_i32 = arith.constant 2 : i32
    %5 = arith.cmpi slt, %1, %c2_i32 : i32
    %6 = arith.extui %5 : i1 to i32
    %c0_i32_1 = arith.constant 0 : i32
    %7 = arith.cmpi ne, %6, %c0_i32_1 : i32
    scf.if %7 {
      %c0 = arith.constant 0 : index
      %c0_2 = arith.constant 0 : index
      %8 = vector.load %arg2[%c0, %c0_2] : memref<8x128xf32, #tpu.memory_space<vmem>>, vector<8x128xf32>
      %c0_3 = arith.constant 0 : index
      %c0_4 = arith.constant 0 : index
      %9 = vector.load %arg3[%c0_3, %c0_4] : memref<8x128xbf16, #tpu.memory_space<vmem>>, vector<8x128xbf16>
      %10 = arith.extf %9 : vector<8x128xbf16> to vector<8x128xf32>
      %11 = math.absf %8 : vector<8x128xf32>
      %cst = arith.constant 0.000000e+00 : f32
      %12 = vector.broadcast %cst : f32 to vector<8x128xf32>
      %13 = arith.subf %12, %11 : vector<8x128xf32>
      %14 = math.exp %13 : vector<8x128xf32>
      %cst_5 = arith.constant 1.000000e+00 : f32
      %15 = vector.broadcast %cst_5 : f32 to vector<8x128xf32>
      %16 = arith.addf %15, %14 : vector<8x128xf32>
      %cst_6 = arith.constant 1.000000e+00 : f32
      %17 = vector.broadcast %cst_6 : f32 to vector<8x128xf32>
      %18 = arith.divf %17, %16 : vector<8x128xf32>
      %cst_7 = arith.constant 0.000000e+00 : f32
      %19 = vector.broadcast %cst_7 : f32 to vector<8x128xf32>
      %20 = arith.cmpf oge, %8, %19 : vector<8x128xf32>
      %cst_8 = arith.constant 1.000000e+00 : f32
      %21 = vector.broadcast %cst_8 : f32 to vector<8x128xf32>
      %22 = arith.select %20, %21, %14 : vector<8x128xi1>, vector<8x128xf32>
      %23 = arith.mulf %22, %18 : vector<8x128xf32>
      %cst_9 = arith.constant 0.000000e+00 : f32
      %24 = vector.broadcast %cst_9 : f32 to vector<8x128xf32>
      %25 = arith.maximumf %8, %24 : vector<8x128xf32>
      %26 = arith.mulf %8, %10 : vector<8x128xf32>
      %27 = arith.subf %25, %26 : vector<8x128xf32>
      %cst_10 = arith.constant 1.000000e+00 : f32
      %28 = vector.broadcast %cst_10 : f32 to vector<8x128xf32>
      %29 = arith.addf %28, %14 : vector<8x128xf32>
      %30 = math.log %29 : vector<8x128xf32>
      %31 = arith.addf %27, %30 : vector<8x128xf32>
      %c0_11 = arith.constant 0 : index
      %c0_12 = arith.constant 0 : index
      %c0_13 = arith.constant 0 : index
      %32 = vector.load %arg4[%c0_11, %c0_12, %c0_13] : memref<1x8x1xf32, #tpu.memory_space<vmem>>, vector<1x8x1xf32>
      %33 = vector.shape_cast %32 : vector<1x8x1xf32> to vector<8x1xf32>
      %34 = arith.mulf %23, %10 : vector<8x128xf32>
      %cst_14 = arith.constant dense<0.000000e+00> : vector<8xf32>
      %35 = vector.multi_reduction <add>, %34, %cst_14 [1] : vector<8x128xf32> to vector<8xf32>
      %36 = vector.shape_cast %35 : vector<8xf32> to vector<8x1xf32>
      %37 = arith.addf %33, %36 : vector<8x1xf32>
      %c0_15 = arith.constant 0 : index
      %c0_16 = arith.constant 0 : index
      %c0_17 = arith.constant 0 : index
      %38 = vector.load %arg4[%c0_15, %c0_16, %c0_17] : memref<1x8x1xf32, #tpu.memory_space<vmem>>, vector<1x8x1xf32>
      %39 = vector.shape_cast %38 : vector<1x8x1xf32> to vector<8x1xf32>
      %40 = vector.shape_cast %37 : vector<8x1xf32> to vector<1x8x1xf32>
      tpu.vector_store %arg4[%c0_15, %c0_16, %c0_17], %40 {strides = array<i32>} : memref<1x8x1xf32, #tpu.memory_space<vmem>>, vector<1x8x1xf32>,
      %c0_18 = arith.constant 0 : index
      %c0_19 = arith.constant 0 : index
      %c0_20 = arith.constant 0 : index
      %41 = vector.load %arg5[%c0_18, %c0_19, %c0_20] : memref<1x8x1xf32, #tpu.memory_space<vmem>>, vector<1x8x1xf32>
      %42 = vector.shape_cast %41 : vector<1x8x1xf32> to vector<8x1xf32>
      %cst_21 = arith.constant dense<0.000000e+00> : vector<8xf32>
      %43 = vector.multi_reduction <add>, %23, %cst_21 [1] : vector<8x128xf32> to vector<8xf32>
      %44 = vector.shape_cast %43 : vector<8xf32> to vector<8x1xf32>
      %45 = arith.addf %42, %44 : vector<8x1xf32>
      %c0_22 = arith.constant 0 : index
      %c0_23 = arith.constant 0 : index
      %c0_24 = arith.constant 0 : index
      %46 = vector.load %arg5[%c0_22, %c0_23, %c0_24] : memref<1x8x1xf32, #tpu.memory_space<vmem>>, vector<1x8x1xf32>
      %47 = vector.shape_cast %46 : vector<1x8x1xf32> to vector<8x1xf32>
      %48 = vector.shape_cast %45 : vector<8x1xf32> to vector<1x8x1xf32>
      tpu.vector_store %arg5[%c0_22, %c0_23, %c0_24], %48 {strides = array<i32>} : memref<1x8x1xf32, #tpu.memory_space<vmem>>, vector<1x8x1xf32>,
      %c0_25 = arith.constant 0 : index
      %c0_26 = arith.constant 0 : index
      %c0_27 = arith.constant 0 : index
      %49 = vector.load %arg6[%c0_25, %c0_26, %c0_27] : memref<1x8x1xf32, #tpu.memory_space<vmem>>, vector<1x8x1xf32>
      %50 = vector.shape_cast %49 : vector<1x8x1xf32> to vector<8x1xf32>
      %cst_28 = arith.constant dense<0.000000e+00> : vector<8xf32>
      %51 = vector.multi_reduction <add>, %10, %cst_28 [1] : vector<8x128xf32> to vector<8xf32>
      %52 = vector.shape_cast %51 : vector<8xf32> to vector<8x1xf32>
      %53 = arith.addf %50, %52 : vector<8x1xf32>
      %c0_29 = arith.constant 0 : index
      %c0_30 = arith.constant 0 : index
      %c0_31 = arith.constant 0 : index
      %54 = vector.load %arg6[%c0_29, %c0_30, %c0_31] : memref<1x8x1xf32, #tpu.memory_space<vmem>>, vector<1x8x1xf32>
      %55 = vector.shape_cast %54 : vector<1x8x1xf32> to vector<8x1xf32>
      %56 = vector.shape_cast %53 : vector<8x1xf32> to vector<1x8x1xf32>
      tpu.vector_store %arg6[%c0_29, %c0_30, %c0_31], %56 {strides = array<i32>} : memref<1x8x1xf32, #tpu.memory_space<vmem>>, vector<1x8x1xf32>,
      %c0_32 = arith.constant 0 : index
      %c0_33 = arith.constant 0 : index
      %c0_34 = arith.constant 0 : index
      %57 = vector.load %arg7[%c0_32, %c0_33, %c0_34] : memref<1x8x1xf32, #tpu.memory_space<vmem>>, vector<1x8x1xf32>
      %58 = vector.shape_cast %57 : vector<1x8x1xf32> to vector<8x1xf32>
      %cst_35 = arith.constant dense<0.000000e+00> : vector<8xf32>
      %59 = vector.multi_reduction <add>, %31, %cst_35 [1] : vector<8x128xf32> to vector<8xf32>
      %60 = vector.shape_cast %59 : vector<8xf32> to vector<8x1xf32>
      %61 = arith.addf %58, %60 : vector<8x1xf32>
      %c0_36 = arith.constant 0 : index
      %c0_37 = arith.constant 0 : index
      %c0_38 = arith.constant 0 : index
      %62 = vector.load %arg7[%c0_36, %c0_37, %c0_38] : memref<1x8x1xf32, #tpu.memory_space<vmem>>, vector<1x8x1xf32>
      %63 = vector.shape_cast %62 : vector<1x8x1xf32> to vector<8x1xf32>
      %64 = vector.shape_cast %61 : vector<8x1xf32> to vector<1x8x1xf32>
      tpu.vector_store %arg7[%c0_36, %c0_37, %c0_38], %64 {strides = array<i32>} : memref<1x8x1xf32, #tpu.memory_space<vmem>>, vector<1x8x1xf32>,
    } else {
    }
    return
  }
  func.func @transform_0(%arg0: i32, %arg1: i32) -> (i32, i32) {
    %c1_i32 = arith.constant 1 : i32
    %0 = arith.muli %arg0, %c1_i32 : i32
    %1 = arith.addi %0, %arg1 : i32
    %c1_i32_0 = arith.constant 1 : i32
    %2 = arith.minsi %1, %c1_i32_0 : i32
    %c0_i32 = arith.constant 0 : i32
    %c0_i32_1 = arith.constant 0 : i32
    return %c0_i32, %2 : i32, i32
  }
  func.func @transform_1(%arg0: i32, %arg1: i32) -> (i32, i32) {
    %c1_i32 = arith.constant 1 : i32
    %0 = arith.muli %arg0, %c1_i32 : i32
    %1 = arith.addi %0, %arg1 : i32
    %c1_i32_0 = arith.constant 1 : i32
    %2 = arith.minsi %1, %c1_i32_0 : i32
    %c0_i32 = arith.constant 0 : i32
    %c0_i32_1 = arith.constant 0 : i32
    return %c0_i32, %2 : i32, i32
  }
  func.func @transform_2(%arg0: i32, %arg1: i32) -> (i32, i32, i32) {
    %c0_i32 = arith.constant 0 : i32
    %c0_i32_0 = arith.constant 0 : i32
    %c0_i32_1 = arith.constant 0 : i32
    return %arg0, %c0_i32, %c0_i32_0 : i32, i32, i32
  }
  func.func @transform_3(%arg0: i32, %arg1: i32) -> (i32, i32, i32) {
    %c0_i32 = arith.constant 0 : i32
    %c0_i32_0 = arith.constant 0 : i32
    %c0_i32_1 = arith.constant 0 : i32
    return %arg0, %c0_i32, %c0_i32_0 : i32, i32, i32
  }
  func.func @transform_4(%arg0: i32, %arg1: i32) -> (i32, i32, i32) {
    %c0_i32 = arith.constant 0 : i32
    %c0_i32_0 = arith.constant 0 : i32
    %c0_i32_1 = arith.constant 0 : i32
    return %arg0, %c0_i32, %c0_i32_0 : i32, i32, i32
  }
  func.func @transform_5(%arg0: i32, %arg1: i32) -> (i32, i32, i32) {
    %c0_i32 = arith.constant 0 : i32
    %c0_i32_0 = arith.constant 0 : i32
    %c0_i32_1 = arith.constant 0 : i32
    return %arg0, %c0_i32, %c0_i32_0 : i32, i32, i32
  }
}

</mosaic_0001>

<llo_original>
// kernel: tpu_custom_call.1
$region0: #{tpu_custom_call.1}
  #allocation0 [shape = 'u32[]', space=smem, size = 0x4, offset = 0x4, fixed_abs, tag = 'smem constant byte address 0x4 - core index']
  #allocation1 [shape = 'u32[144,128]{1,0:T(1,128)}', space=vmem, size = 0x12000, scoped, tag = 'internal scratch']
  %s0 = inlined_call_operand.hbm [shape: f32[8,256], index: 0, kind: input, shape index: {}]
  %s1 = inlined_call_operand.hbm [shape: bf16[8,256], index: 1, kind: input, shape index: {}]
  %s2 = inlined_call_operand.vmem [shape: f32[2,8,1], index: 2, kind: output, shape index: {0}]
  %s3 = inlined_call_operand.vmem [shape: f32[2,8,1], index: 3, kind: output, shape index: {1}]
  %s4 = inlined_call_operand.vmem [shape: f32[2,8,1], index: 4, kind: output, shape index: {2}]
  %s5 = inlined_call_operand.vmem [shape: f32[2,8,1], index: 5, kind: output, shape index: {3}]
  %6 = xla_tuple %s2, %s3, %s4, %s5
  %s7 = sld [smem:[#allocation0]]
  $region81: #{tpu_custom_call.1} parent=0
    _
  %s9 = ssub.s32 1, %s7
  %s10 = scalar_select 0, %s9, %s7
  $region1: #{tpu_custom_call.1} parent=0
    #allocation2 [shape = 'u8[8192]{0}', space=vmem, size = 0x2000, scoped, tag = 'input window, operand 0']
    #allocation3 [shape = 's32[2]{0}', space=sflag, size = 0x8, scoped, tag = 'scoped memory for tpu_custom_call.1']
    #allocation4 [shape = 'u8[4096]{0}', space=vmem, size = 0x1000, scoped, tag = 'input window, operand 1']
    #allocation5 [shape = 's32[2]{0}', space=sflag, size = 0x8, scoped, tag = 'scoped memory for tpu_custom_call.1']
    %11 = vsyncpa [#allocation3], 0
    %s12 = scalar_lea.sflag [#allocation3], 1
    %13 = vsyncpa %s12, 0
    %14 = vsyncpa [#allocation5], 0
    %s15 = scalar_lea.sflag [#allocation5], 1
    %16 = vsyncpa %s15, 0
    loop: start=0, step=1, limit=4
    $region2: #{tpu_custom_call.1} parent=1 // loop_pre_header
      _
    $region3: #{tpu_custom_call.1} parent=1 // loop_header
      %s18 = sphi 0, %s22
      %p19 = scmp.ge.s32.totalorder %s18, 4
      %s25 = sphi 0, %s37
      %s26 = sphi 0, %s33
      %s27 = sphi 0, %s25
      %s28 = sphi 0, %s26
      %s29 = sphi 0, %s27
      %s30 = sphi 0, %s28
      %s46 = sphi 0, %s48
      %s49 = sphi 0, %s46
      %s50 = sphi 0, %s49
      %s66 = sphi 0, %s50
      %s78 = sphi 0, %s80
      %s81 = sphi 0, %s78
      %s82 = sphi 0, %s81
      %s98 = sphi 0, %s82
      %s104 = sphi 0, %s106
      %s107 = sphi 0, %s104
      %s108 = sphi 0, %s107
      %s124 = sphi 0, %s108
      %s130 = sphi 0, %s132
      %s133 = sphi 0, %s130
      %s134 = sphi 0, %s133
      %s150 = sphi 0, %s134
      %s156 = sphi 0, %s158
      %s159 = sphi 0, %s156
      %s160 = sphi 0, %s159
      %s176 = sphi 0, %s160
      %s182 = sphi 0, %s184
      %s185 = sphi 0, %s182
      %s186 = sphi 0, %s185
      %s202 = sphi 0, %s186
    $region4: #{tpu_custom_call.1} parent=1 // loop_header_branch
      %21 = sbr.rel (%p19) target = $region8
    $region5: #{tpu_custom_call.1} parent=1 // loop_body
      %s23 = ssub.s32 %s18, 1
      %s24 = ssub.s32 %s18, 2
      %s31 = sadd.s32 1, %s26
      %p32 = scmp.ge.s32.totalorder %s31, 1
      %s33 = scalar_select %p32, 0, %s31
      %s34 = sadd.s32 1, %s25
      %s35 = scalar_select %p32, %s34, %s25
      %p36 = scmp.ge.s32.totalorder %s35, 2
      %s37 = scalar_select %p36, 0, %s35
      %s38 = sadd.s32 %s25, %s26
      %p39 = scmp.lt.s32.totalorder %s38, 1
      %s40 = scalar_select %p39, %s38, 1
      %s41 = sadd.s32 %s37, %s33
      %p42 = scmp.lt.s32.totalorder %s41, 1
      %s43 = scalar_select %p42, %s41, 1
      %s44 = ssub.s32 %s40, %s43
      %p45 = scmp.eq.s32.totalorder %s44, 0
      %s47 = sadd.s32 %s46, 1
      %s48 = scalar_select %p45, %s46, %s47
      %p51 = pneg %p45
      %p52 = scmp.eq.s32.totalorder %s18, 1
      %p53 = por %p51, %p52
      %p54 = scmp.ne.s32.totalorder %s46, %s49
      %p55 = scmp.eq.s32.totalorder %s18, 0
      %p56 = por %p54, %p55
      %p57 = scmp.ne.s32.totalorder %s46, %s49
      %p58 = scmp.eq.s32.totalorder %s23, 1
      %p59 = por %p57, %p58
      %p60 = scmp.ne.s32.totalorder %s49, %s50
      %p61 = scmp.eq.s32.totalorder %s23, 0
      %p62 = por %p60, %p61
      %p63 = scmp.ne.s32.totalorder %s49, %s50
      %p64 = scmp.eq.s32.totalorder %s24, 1
      %p65 = por %p63, %p64
      %p67 = scmp.ne.s32.totalorder %s50, %s66
      %p68 = scmp.eq.s32.totalorder %s24, 0
      %p69 = por %p67, %p68
      %s70 = sadd.s32 %s25, %s26
      %p71 = scmp.lt.s32.totalorder %s70, 1
      %s72 = scalar_select %p71, %s70, 1
      %s73 = sadd.s32 %s37, %s33
      %p74 = scmp.lt.s32.totalorder %s73, 1
      %s75 = scalar_select %p74, %s73, 1
      %s76 = ssub.s32 %s72, %s75
      %p77 = scmp.eq.s32.totalorder %s76, 0
      %s79 = sadd.s32 %s78, 1
      %s80 = scalar_select %p77, %s78, %s79
      %p83 = pneg %p77
      %p84 = scmp.eq.s32.totalorder %s18, 1
      %p85 = por %p83, %p84
      %p86 = scmp.ne.s32.totalorder %s78, %s81
      %p87 = scmp.eq.s32.totalorder %s18, 0
      %p88 = por %p86, %p87
      %p89 = scmp.ne.s32.totalorder %s78, %s81
      %p90 = scmp.eq.s32.totalorder %s23, 1
      %p91 = por %p89, %p90
      %p92 = scmp.ne.s32.totalorder %s81, %s82
      %p93 = scmp.eq.s32.totalorder %s23, 0
      %p94 = por %p92, %p93
      %p95 = scmp.ne.s32.totalorder %s81, %s82
      %p96 = scmp.eq.s32.totalorder %s24, 1
      %p97 = por %p95, %p96
      %p99 = scmp.ne.s32.totalorder %s82, %s98
      %p100 = scmp.eq.s32.totalorder %s24, 0
      %p101 = por %p99, %p100
      %s102 = ssub.s32 %s25, %s37
      %p103 = scmp.eq.s32.totalorder %s102, 0
      %s105 = sadd.s32 %s104, 1
      %s106 = scalar_select %p103, %s104, %s105
      %p109 = pneg %p103
      %p110 = scmp.eq.s32.totalorder %s18, 1
      %p111 = por %p109, %p110
      %p112 = scmp.ne.s32.totalorder %s104, %s107
      %p113 = scmp.eq.s32.totalorder %s18, 0
      %p114 = por %p112, %p113
      %p115 = scmp.ne.s32.totalorder %s104, %s107
      %p116 = scmp.eq.s32.totalorder %s23, 1
      %p117 = por %p115, %p116
      %p118 = scmp.ne.s32.totalorder %s107, %s108
      %p119 = scmp.eq.s32.totalorder %s23, 0
      %p120 = por %p118, %p119
      %p121 = scmp.ne.s32.totalorder %s107, %s108
      %p122 = scmp.eq.s32.totalorder %s24, 1
      %p123 = por %p121, %p122
      %p125 = scmp.ne.s32.totalorder %s108, %s124
      %p126 = scmp.eq.s32.totalorder %s24, 0
      %p127 = por %p125, %p126
      %s128 = ssub.s32 %s25, %s37
      %p129 = scmp.eq.s32.totalorder %s128, 0
      %s131 = sadd.s32 %s130, 1
      %s132 = scalar_select %p129, %s130, %s131
      %p135 = pneg %p129
      %p136 = scmp.eq.s32.totalorder %s18, 1
      %p137 = por %p135, %p136
      %p138 = scmp.ne.s32.totalorder %s130, %s133
      %p139 = scmp.eq.s32.totalorder %s18, 0
      %p140 = por %p138, %p139
      %p141 = scmp.ne.s32.totalorder %s130, %s133
      %p142 = scmp.eq.s32.totalorder %s23, 1
      %p143 = por %p141, %p142
      %p144 = scmp.ne.s32.totalorder %s133, %s134
      %p145 = scmp.eq.s32.totalorder %s23, 0
      %p146 = por %p144, %p145
      %p147 = scmp.ne.s32.totalorder %s133, %s134
      %p148 = scmp.eq.s32.totalorder %s24, 1
      %p149 = por %p147, %p148
      %p151 = scmp.ne.s32.totalorder %s134, %s150
      %p152 = scmp.eq.s32.totalorder %s24, 0
      %p153 = por %p151, %p152
      %s154 = ssub.s32 %s25, %s37
      %p155 = scmp.eq.s32.totalorder %s154, 0
      %s157 = sadd.s32 %s156, 1
      %s158 = scalar_select %p155, %s156, %s157
      %p161 = pneg %p155
      %p162 = scmp.eq.s32.totalorder %s18, 1
      %p163 = por %p161, %p162
      %p164 = scmp.ne.s32.totalorder %s156, %s159
      %p165 = scmp.eq.s32.totalorder %s18, 0
      %p166 = por %p164, %p165
      %p167 = scmp.ne.s32.totalorder %s156, %s159
      %p168 = scmp.eq.s32.totalorder %s23, 1
      %p169 = por %p167, %p168
      %p170 = scmp.ne.s32.totalorder %s159, %s160
      %p171 = scmp.eq.s32.totalorder %s23, 0
      %p172 = por %p170, %p171
      %p173 = scmp.ne.s32.totalorder %s159, %s160
      %p174 = scmp.eq.s32.totalorder %s24, 1
      %p175 = por %p173, %p174
      %p177 = scmp.ne.s32.totalorder %s160, %s176
      %p178 = scmp.eq.s32.totalorder %s24, 0
      %p179 = por %p177, %p178
      %s180 = ssub.s32 %s25, %s37
      %p181 = scmp.eq.s32.totalorder %s180, 0
      %s183 = sadd.s32 %s182, 1
      %s184 = scalar_select %p181, %s182, %s183
      %p187 = pneg %p181
      %p188 = scmp.eq.s32.totalorder %s18, 1
      %p189 = por %p187, %p188
      %p190 = scmp.ne.s32.totalorder %s182, %s185
      %p191 = scmp.eq.s32.totalorder %s18, 0
      %p192 = por %p190, %p191
      %p193 = scmp.ne.s32.totalorder %s182, %s185
      %p194 = scmp.eq.s32.totalorder %s23, 1
      %p195 = por %p193, %p194
      %p196 = scmp.ne.s32.totalorder %s185, %s186
      %p197 = scmp.eq.s32.totalorder %s23, 0
      %p198 = por %p196, %p197
      %p199 = scmp.ne.s32.totalorder %s185, %s186
      %p200 = scmp.eq.s32.totalorder %s24, 1
      %p201 = por %p199, %p200
      %p203 = scmp.ne.s32.totalorder %s186, %s202
      %p204 = scmp.eq.s32.totalorder %s24, 0
      %p205 = por %p203, %p204
      %p206 = scmp.le.s32.totalorder 1, %s18
      %p207 = scmp.lt.s32.totalorder %s18, 3
      %p208 = pnand %p206, %p207
      %p209 = pneg %p208
      // Predicated region
      $region9: #{tpu_custom_call.1} parent=5 // pred_check
        _
      $region10: #{tpu_custom_call.1} parent=5 // pred_check_branch
        %211 = sbr.rel (%p208) target = $region12
      $region11: #{tpu_custom_call.1} parent=5 // pred_region
        %s212 = ssub.s32 %s18, 1
      $region12: #{tpu_custom_call.1} parent=5 // pred_fallthru
        _
      %p213 = scmp.lt.s32.totalorder %s18, 2
      // Predicated region
      $region13: #{tpu_custom_call.1} parent=5 // pred_check
        %p214 = pneg %p213
      $region14: #{tpu_custom_call.1} parent=5 // pred_check_branch
        %216 = sbr.rel (%p214) target = $region16
      $region15: #{tpu_custom_call.1} parent=5 // pred_region
        // Predicated region
        $region17: #{tpu_custom_call.1} parent=15 // pred_check
          %p217 = pneg %p56
        $region18: #{tpu_custom_call.1} parent=15 // pred_check_branch
          %219 = sbr.rel (%p217) target = $region20
        $region19: #{tpu_custom_call.1} parent=15 // pred_region
          %s220 = sand.u32 %s46, 1
          %s221 = scalar_lea.sflag [#allocation3], %s220
          %s222 = sand.u32 %s46, 1
          %s223 = smul.addr %s222, 8
          %s224 = scalar_lea.vmem [#allocation2], %s223
          %s225 = sadd.s32 %s25, %s26
          %p226 = scmp.lt.s32.totalorder %s225, 1
          %s227 = scalar_select %p226, %s225, 1
          %s229 = ssub.s32 128, 128
          %230 = vsyncadd %s221, %s229
          %s231 = smul.addr %s227, 128
          %s232 = scalar_lea.hbm %s0, %s231
          %s234 = sshll.u32 %s224, 4
          %s235 = int_to_ptr.vmem [resolvable:$true] %s234
          %237 = dma.hbm_to_vmem [thread:$0]  %s232, 128, %s235, %s221
        $region20: #{tpu_custom_call.1} parent=15 // pred_fallthru
          _
        // Predicated region
        $region21: #{tpu_custom_call.1} parent=15 // pred_check
          %p238 = pneg %p88
        $region22: #{tpu_custom_call.1} parent=15 // pred_check_branch
          %240 = sbr.rel (%p238) target = $region24
        $region23: #{tpu_custom_call.1} parent=15 // pred_region
          %s241 = sand.u32 %s78, 1
          %s242 = scalar_lea.sflag [#allocation5], %s241
          %s243 = sand.u32 %s78, 1
          %s244 = smul.addr %s243, 4
          %s245 = scalar_lea.vmem [#allocation4], %s244
          %s246 = sadd.s32 %s25, %s26
          %p247 = scmp.lt.s32.totalorder %s246, 1
          %s248 = scalar_select %p247, %s246, 1
          %s250 = ssub.s32 64, 64
          %251 = vsyncadd %s242, %s250
          %s252 = smul.addr %s248, 64
          %s253 = scalar_lea.hbm %s1, %s252
          %s255 = sshll.u32 %s245, 4
          %s256 = int_to_ptr.vmem [resolvable:$true] %s255
          %258 = dma.hbm_to_vmem [thread:$0]  %s253, 64, %s256, %s242
        $region24: #{tpu_custom_call.1} parent=15 // pred_fallthru
          _
      $region16: #{tpu_custom_call.1} parent=5 // pred_fallthru
        _
      %p259 = scmp.le.s32.totalorder 1, %s18
      %p260 = scmp.lt.s32.totalorder %s18, 3
      %p261 = pnand %p259, %p260
      %p262 = pneg %p261
      // Predicated region
      $region25: #{tpu_custom_call.1} parent=5 // pred_check
        _
      $region26: #{tpu_custom_call.1} parent=5 // pred_check_branch
        %264 = sbr.rel (%p261) target = $region28
      $region27: #{tpu_custom_call.1} parent=5 // pred_region
        %s265 = ssub.s32 %s18, 1
        %s266 = sand.u32 %s49, 1
        %s267 = scalar_lea.sflag [#allocation3], %s266
        %s268 = sand.u32 %s49, 1
        %s269 = smul.addr %s268, 8
        %s270 = scalar_lea.vmem [#allocation2], %s269
        // Predicated region
        $region29: #{tpu_custom_call.1} parent=27 // pred_check
          %p271 = pneg %p62
        $region30: #{tpu_custom_call.1} parent=27 // pred_check_branch
          %273 = sbr.rel (%p271) target = $region32
        $region31: #{tpu_custom_call.1} parent=27 // pred_region
          %274 = dma.done %s267, 128
        $region32: #{tpu_custom_call.1} parent=27 // pred_fallthru
          _
        %s275 = sand.u32 %s81, 1
        %s276 = scalar_lea.sflag [#allocation5], %s275
        %s277 = sand.u32 %s81, 1
        %s278 = smul.addr %s277, 4
        %s279 = scalar_lea.vmem [#allocation4], %s278
        // Predicated region
        $region33: #{tpu_custom_call.1} parent=27 // pred_check
          %p280 = pneg %p94
        $region34: #{tpu_custom_call.1} parent=27 // pred_check_branch
          %282 = sbr.rel (%p280) target = $region36
        $region35: #{tpu_custom_call.1} parent=27 // pred_region
          %283 = dma.done %s276, 64
        $region36: #{tpu_custom_call.1} parent=27 // pred_fallthru
          _
        %s284 = sand.u32 %s49, 1
        %s285 = scalar_lea.sflag [#allocation3], %s284
        %s286 = sand.u32 %s49, 1
        %s287 = smul.addr %s286, 8
        %s288 = scalar_lea.vmem [#allocation2], %s287
        %p289 = pneg %p62
        %p290 = pneg %p59
        %s291 = sand.u32 %s81, 1
        %s292 = scalar_lea.sflag [#allocation5], %s291
        %s293 = sand.u32 %s81, 1
        %s294 = smul.addr %s293, 4
        %s295 = scalar_lea.vmem [#allocation4], %s294
        %p296 = pneg %p94
        %p297 = pneg %p91
        %p298 = pneg %p120
        %p299 = pneg %p117
        %p300 = scmp.lt.s32.totalorder %s27, 1
        %s301 = scalar_select %p300, %s27, 1
        %s302 = smul.addr %s301, 8
        %s303 = scalar_lea.vmem %s2, %s302
        %p304 = pneg %p146
        %p305 = pneg %p143
        %p306 = scmp.lt.s32.totalorder %s27, 1
        %s307 = scalar_select %p306, %s27, 1
        %s308 = smul.addr %s307, 8
        %s309 = scalar_lea.vmem %s3, %s308
        %p310 = pneg %p172
        %p311 = pneg %p169
        %p312 = scmp.lt.s32.totalorder %s27, 1
        %s313 = scalar_select %p312, %s27, 1
        %s314 = smul.addr %s313, 8
        %s315 = scalar_lea.vmem %s4, %s314
        %p316 = pneg %p198
        %p317 = pneg %p195
        %p318 = scmp.lt.s32.totalorder %s27, 1
        %s319 = scalar_select %p318, %s27, 1
        %s320 = smul.addr %s319, 8
        %s321 = scalar_lea.vmem %s5, %s320
        %s322 = sadd.s32 %s27, %s28
        %p323 = scmp.lt.s32.totalorder %s322, 1
        %s324 = scalar_select %p323, %s322, 1
        %s325 = sadd.s32 %s27, %s28
        %p326 = scmp.lt.s32.totalorder %s325, 1
        %s327 = scalar_select %p326, %s325, 1
        %p328 = scmp.lt.s32.totalorder %s27, 1
        %s329 = scalar_select %p328, %s27, 1
        %s330 = smul.addr %s329, 8
        %s331 = scalar_lea.vmem %s2, %s330
        %p332 = scmp.lt.s32.totalorder %s27, 1
        %s333 = scalar_select %p332, %s27, 1
        %s334 = smul.addr %s333, 8
        %s335 = scalar_lea.vmem %s3, %s334
        %p336 = scmp.lt.s32.totalorder %s27, 1
        %s337 = scalar_select %p336, %s27, 1
        %s338 = smul.addr %s337, 8
        %s339 = scalar_lea.vmem %s4, %s338
        %p340 = scmp.lt.s32.totalorder %s27, 1
        %s341 = scalar_select %p340, %s27, 1
        %s342 = smul.addr %s341, 8
        %s343 = scalar_lea.vmem %s5, %s342
        %s344 = sadd.s32 %s27, %s28
        %p345 = scmp.eq.s32.totalorder %s28, 0
        // Predicated region
        $region37: #{tpu_custom_call.1} parent=27 // pred_check
          %p346 = pneg %p345
        $region38: #{tpu_custom_call.1} parent=27 // pred_check_branch
          %348 = sbr.rel (%p346) target = $region40
        $region39: #{tpu_custom_call.1} parent=27 // pred_region
          %vm349 = vcmask 7168
          %350 = vst.msk [vmem:[%s331] sm:$0xff] %vm349, 0.0
          %351 = vst.msk [vmem:[%s335] sm:$0xff] %vm349, 0.0
          %352 = vst.msk [vmem:[%s339] sm:$0xff] %vm349, 0.0
          %353 = vst.msk [vmem:[%s343] sm:$0xff] %vm349, 0.0
        $region40: #{tpu_custom_call.1} parent=27 // pred_fallthru
          _
        %p354 = scmp.lt.s32.totalorder %s344, 2
        // Predicated region
        $region41: #{tpu_custom_call.1} parent=27 // pred_check
          %p355 = pneg %p354
        $region42: #{tpu_custom_call.1} parent=27 // pred_check_branch
          %357 = sbr.rel (%p355) target = $region44
        $region43: #{tpu_custom_call.1} parent=27 // pred_region
          %v358 = vld [vmem:[%s270] sm:$0xff]
          %v359 = vld [vmem:[%s279] sm:$0xf]
          %v360 = vunpack.c.l.bf16 %v359
          %v361 = vand.u32 2147483647, %v358
          %v362 = vsub.f32 0.0, %v361
          %v363 = vmul.f32 %v362, 1.442695
          %v364 = vpow.pop %v363
          %v365 = vadd.f32 %v364, 1.0
          %v366 = vrcp.pop %v365
          %v367 = vmul.f32 1.0, %v366
          %vm368 = vcmp.ge.f32.partialorder %v358, 0.0
          %v369 = vsel %vm368, 1.0, %v364
          %v370 = vmul.f32 %v369, %v367
          %v371 = vmax.f32 %v358, 0.0
          %v372 = vmul.f32 %v358, %v360
          %v373 = vsub.f32 %v371, %v372
          %v374 = vlog2.pop %v365
          %v375 = vmul.f32 %v374, 0.6931472
          %v376 = vadd.f32 %v373, %v375
          %v377 = vld [vmem:[%s331] sm:$0xff]
          %v378 = vmul.f32 %v370, %v360
          %379 = vadd.xlane.f32.xlu0 %v378
          %v380 = vpop.xlane.xlu0 %379
          %v381 = vadd.f32 %v377, %v380
          %vm382 = vcmask 7168
          %383 = vst.msk [vmem:[%s331] sm:$0xff] %vm382, %v381
          %v384 = vld [vmem:[%s335] sm:$0xff]
          %385 = vadd.xlane.f32.xlu0 %v370
          %v386 = vpop.xlane.xlu0 %385
          %v387 = vadd.f32 %v384, %v386
          %388 = vst.msk [vmem:[%s335] sm:$0xff] %vm382, %v387
          %v389 = vld [vmem:[%s339] sm:$0xff]
          %390 = vadd.xlane.f32.xlu0 %v360
          %v391 = vpop.xlane.xlu0 %390
          %v392 = vadd.f32 %v389, %v391
          %393 = vst.msk [vmem:[%s339] sm:$0xff] %vm382, %v392
          %v394 = vld [vmem:[%s343] sm:$0xff]
          %395 = vadd.xlane.f32.xlu0 %v376
          %v396 = vpop.xlane.xlu0 %395
          %v397 = vadd.f32 %v394, %v396
          %398 = vst.msk [vmem:[%s343] sm:$0xff] %vm382, %v397
        $region44: #{tpu_custom_call.1} parent=27 // pred_fallthru
          _
        %p399 = scmp.lt.s32.totalorder %s27, 1
        %s400 = scalar_select %p399, %s27, 1
        %s401 = smul.addr %s400, 8
        %s402 = scalar_lea.vmem %s2, %s401
        %p403 = scmp.lt.s32.totalorder %s27, 1
        %s404 = scalar_select %p403, %s27, 1
        %s405 = smul.addr %s404, 8
        %s406 = scalar_lea.vmem %s3, %s405
        %p407 = scmp.lt.s32.totalorder %s27, 1
        %s408 = scalar_select %p407, %s27, 1
        %s409 = smul.addr %s408, 8
        %s410 = scalar_lea.vmem %s4, %s409
        %p411 = scmp.lt.s32.totalorder %s27, 1
        %s412 = scalar_select %p411, %s27, 1
        %s413 = smul.addr %s412, 8
        %s414 = scalar_lea.vmem %s5, %s413
        // Predicated region
        $region45: #{tpu_custom_call.1} parent=27 // pred_check
          %p415 = pneg %p117
        $region46: #{tpu_custom_call.1} parent=27 // pred_check_branch
          %417 = sbr.rel (%p415) target = $region48
        $region47: #{tpu_custom_call.1} parent=27 // pred_region
          _
        $region48: #{tpu_custom_call.1} parent=27 // pred_fallthru
          _
        // Predicated region
        $region49: #{tpu_custom_call.1} parent=27 // pred_check
          %p418 = pneg %p143
        $region50: #{tpu_custom_call.1} parent=27 // pred_check_branch
          %420 = sbr.rel (%p418) target = $region52
        $region51: #{tpu_custom_call.1} parent=27 // pred_region
          _
        $region52: #{tpu_custom_call.1} parent=27 // pred_fallthru
          _
        // Predicated region
        $region53: #{tpu_custom_call.1} parent=27 // pred_check
          %p421 = pneg %p169
        $region54: #{tpu_custom_call.1} parent=27 // pred_check_branch
          %423 = sbr.rel (%p421) target = $region56
        $region55: #{tpu_custom_call.1} parent=27 // pred_region
          _
        $region56: #{tpu_custom_call.1} parent=27 // pred_fallthru
          _
        // Predicated region
        $region57: #{tpu_custom_call.1} parent=27 // pred_check
          %p424 = pneg %p195
        $region58: #{tpu_custom_call.1} parent=27 // pred_check_branch
          %426 = sbr.rel (%p424) target = $region60
        $region59: #{tpu_custom_call.1} parent=27 // pred_region
          _
        $region60: #{tpu_custom_call.1} parent=27 // pred_fallthru
          _
      $region28: #{tpu_custom_call.1} parent=5 // pred_fallthru
        _
      %p427 = scmp.le.s32.totalorder 2, %s18
      // Predicated region
      $region61: #{tpu_custom_call.1} parent=5 // pred_check
        %p428 = pneg %p427
      $region62: #{tpu_custom_call.1} parent=5 // pred_check_branch
        %430 = sbr.rel (%p428) target = $region64
      $region63: #{tpu_custom_call.1} parent=5 // pred_region
        %s431 = ssub.s32 %s18, 2
        // Predicated region
        $region65: #{tpu_custom_call.1} parent=63 // pred_check
          %p432 = pneg %p123
        $region66: #{tpu_custom_call.1} parent=63 // pred_check_branch
          %434 = sbr.rel (%p432) target = $region68
        $region67: #{tpu_custom_call.1} parent=63 // pred_region
          %p435 = scmp.lt.s32.totalorder %s29, 1
          %s436 = scalar_select %p435, %s29, 1
          %s437 = smul.addr %s436, 8
          %s438 = scalar_lea.vmem %s2, %s437
        $region68: #{tpu_custom_call.1} parent=63 // pred_fallthru
          _
        // Predicated region
        $region69: #{tpu_custom_call.1} parent=63 // pred_check
          %p439 = pneg %p149
        $region70: #{tpu_custom_call.1} parent=63 // pred_check_branch
          %441 = sbr.rel (%p439) target = $region72
        $region71: #{tpu_custom_call.1} parent=63 // pred_region
          %p442 = scmp.lt.s32.totalorder %s29, 1
          %s443 = scalar_select %p442, %s29, 1
          %s444 = smul.addr %s443, 8
          %s445 = scalar_lea.vmem %s3, %s444
        $region72: #{tpu_custom_call.1} parent=63 // pred_fallthru
          _
        // Predicated region
        $region73: #{tpu_custom_call.1} parent=63 // pred_check
          %p446 = pneg %p175
        $region74: #{tpu_custom_call.1} parent=63 // pred_check_branch
          %448 = sbr.rel (%p446) target = $region76
        $region75: #{tpu_custom_call.1} parent=63 // pred_region
          %p449 = scmp.lt.s32.totalorder %s29, 1
          %s450 = scalar_select %p449, %s29, 1
          %s451 = smul.addr %s450, 8
          %s452 = scalar_lea.vmem %s4, %s451
        $region76: #{tpu_custom_call.1} parent=63 // pred_fallthru
          _
        // Predicated region
        $region77: #{tpu_custom_call.1} parent=63 // pred_check
          %p453 = pneg %p201
        $region78: #{tpu_custom_call.1} parent=63 // pred_check_branch
          %455 = sbr.rel (%p453) target = $region80
        $region79: #{tpu_custom_call.1} parent=63 // pred_region
          %p456 = scmp.lt.s32.totalorder %s29, 1
          %s457 = scalar_select %p456, %s29, 1
          %s458 = smul.addr %s457, 8
          %s459 = scalar_lea.vmem %s5, %s458
        $region80: #{tpu_custom_call.1} parent=63 // pred_fallthru
          _
      $region64: #{tpu_custom_call.1} parent=5 // pred_fallthru
        _
    $region6: #{tpu_custom_call.1} parent=1 // loop_footer
      %s22 = sadd.s32 1, %s18
    $region7: #{tpu_custom_call.1} parent=1 // loop_footer_branch
      %17 = sbr.rel target = $region3
    $region8: #{tpu_custom_call.1} parent=1 // loop_exit
      _
    %460 = vsyncpa [#allocation3], 1
    %s461 = scalar_lea.sflag [#allocation3], 1
    %462 = vsyncpa %s461, 1
    %463 = vsyncpa [#allocation5], 1
    %s464 = scalar_lea.sflag [#allocation5], 1
    %465 = vsyncpa %s464, 1

</llo_original>
